<compile_context>
chip_gen: v7x
topology: tpu7x:2x2x1
jax: 0.10.0
libtpu: 0.0.40
codegen_flags: <defaults>
</compile_context>

<pallas_src>
import numpy as np
import jax
import jax.numpy as jnp
from jax.experimental import pallas as pl
from jax.experimental.pallas import tpu as pltpu


def _value_rnn_kernel(x_ref, wih_ref, whh_ref, b_ref, fcw_ref, fcb_ref, out_ref):
    """One grid step == one batch tile; the whole T-step recurrence runs here."""
    TB, T, I = x_ref.shape
    H4 = whh_ref.shape[1]
    H = H4 // 4

    # ---- Hoisted input projection (one well-shaped MXU matmul, f32 acc) ----
    # x is already bf16 (cast in the wrapper); reshape only collapses major dims.
    x2 = x_ref[...].reshape(TB * T, I)                                 # (TB*T, I) bf16
    pre = (jnp.dot(x2, wih_ref[...], preferred_element_type=jnp.float32)
           + b_ref[...])                                               # (TB*T, 4H) f32
    pre = pre.reshape(TB, T, H4)                                       # (TB, T, 4H)

    whh = whh_ref[...]                                                 # (H, 4H) bf16
    # TODO(synk): optionally pin W_hh in MXU weight regs across the time loop
    # via pltpu.matmul_push_rhs / matmul_acc_lhs / matmul_pop.

    # Gate columns are wrapper-permuted to [i | f | o | g]: one contiguous
    # sigmoid over the first 3H columns, one tanh over the last H columns.
    def lstm_step(gates, c):
        sig = jax.nn.sigmoid(gates[:, :3 * H])
        g_g = jnp.tanh(gates[:, 3 * H:])
        i_g = sig[:, 0 * H:1 * H]
        f_g = sig[:, 1 * H:2 * H]
        o_g = sig[:, 2 * H:3 * H]
        c_new = f_g * c + i_g * g_g
        h_new = o_g * jnp.tanh(c_new)
        return h_new, c_new

    # Split the batch tile into independent sub-tiles: their recurrences share
    # no data, so the scheduler can overlap one sub-tile's MXU push/drain with
    # the other's EUP/VPU gate math inside the same unrolled step.
    n_sub = 2 if (TB % 2 == 0 and TB >= 16) else 1
    sb = TB // n_sub

    hs = [jnp.zeros((sb, H), jnp.float32) for _ in range(n_sub)]
    cs = [jnp.zeros((sb, H), jnp.float32) for _ in range(n_sub)]

    # Note: h is cast to bf16 only as an MXU operand; h/c themselves stay f32,
    # so rounding does not compound through the recurrent state.
    UNROLL_T_MAX = 32
    if T <= UNROLL_T_MAX:
        # Fully unrolled: one basic block, cross-step scheduling visibility.
        for t in range(T):
            for s in range(n_sub):
                gates = (pre[s * sb:(s + 1) * sb, t, :]
                         + jnp.dot(hs[s].astype(jnp.bfloat16), whh,
                                   preferred_element_type=jnp.float32))
                hs[s], cs[s] = lstm_step(gates, cs[s])
    else:
        # Large T: partial unroll caps vreg live ranges / compile time.
        def body(t, carry):
            hl, cl = carry
            pre_t = jax.lax.dynamic_slice_in_dim(pre, t, 1, axis=1)    # (TB,1,4H)
            pre_t = pre_t.reshape(TB, H4)
            new_h, new_c = [], []
            for s in range(n_sub):
                gates = (pre_t[s * sb:(s + 1) * sb, :]
                         + jnp.dot(hl[s].astype(jnp.bfloat16), whh,
                                   preferred_element_type=jnp.float32))
                h_new, c_new = lstm_step(gates, cl[s])
                new_h.append(h_new)
                new_c.append(c_new)
            return tuple(new_h), tuple(new_c)

        hs_t, _ = jax.lax.fori_loop(0, T, body, (tuple(hs), tuple(cs)), unroll=4)
        hs = list(hs_t)

    # ---- ReLU + Linear(H, 1): VPU multiply + lane reduction (no N=1 matmul) --
    fcw = fcw_ref[...]                                                 # (1, H) f32
    fcb = fcb_ref[...]                                                 # (1, 1) f32
    for s in range(n_sub):
        relu_h = jnp.maximum(hs[s], 0.0)                               # (sb, H)
        value = jnp.sum(relu_h * fcw, axis=-1, keepdims=True) + fcb    # (sb, 1)
        out_ref[s * sb:(s + 1) * sb, :] = value.astype(out_ref.dtype)


def value_rnn_forward(state, params, *, batch_block=None):
    """state: (B, T, A, F) float32.  Returns value: (B, 1) float32."""
    B, T, A, F = state.shape
    I = A * F
    H = params["w_hh"].shape[1]                          # w_hh: (4H, H)

    # bf16 staging in the wrapper: halves the HBM->VMEM bytes of the only
    # per-grid-step streamed array (the matmul consumes bf16 anyway).
    x = state.reshape(B, T, I).astype(jnp.bfloat16)      # batch-first, no transpose

    # Gate-column permutation [i, f, g, o] -> [i, f, o | g] so the kernel runs
    # a single contiguous sigmoid over (:, :3H) and a single tanh over (:, 3H:).
    perm = np.concatenate([np.arange(0, H), np.arange(H, 2 * H),
                           np.arange(3 * H, 4 * H), np.arange(2 * H, 3 * H)])
    wih_t = params["w_ih"].T[:, perm].astype(jnp.bfloat16)             # (I, 4H)
    whh_t = params["w_hh"].T[:, perm].astype(jnp.bfloat16)             # (H, 4H)
    bias = (params["b_ih"] + params["b_hh"])[perm].reshape(1, 4 * H).astype(jnp.float32)
    fc_w = params["fc_w"].reshape(1, H).astype(jnp.float32)
    fc_b = params["fc_b"].reshape(1, 1).astype(jnp.float32)

    # ---- Batch-tile selection + explicit VMEM budget (sized for v7x 64 MiB) --
    def _vmem_estimate(tb):
        lane_i = -(-I // 128) * 128                      # x lanes padded to 128
        x_tile = tb * T * lane_i * 2                     # bf16 x tile
        pre_b = tb * T * 4 * H * 4                       # f32 hoisted projection
        w_b = (I * 4 * H + H * 4 * H) * 2 * 2            # bf16 weights, double-buffered
        tmp = tb * 4 * H * 4 * 8                         # per-step temporaries (rough)
        return 2 * x_tile + pre_b + w_b + tmp + (2 << 20)

    if batch_block is None:
        if B <= 256:
            batch_block = B
        else:
            batch_block = B
            for cand in (256, 128, 64, 32, 16):
                if B % cand == 0:
                    batch_block = cand
                    break
        # Shrink until the footprint fits a conservative budget (v7x headroom).
        budget = 40 << 20
        while (batch_block > 16 and batch_block % 2 == 0
               and _vmem_estimate(batch_block) > budget):
            batch_block //= 2
    assert B % batch_block == 0, "B must be a multiple of batch_block"
    nb = B // batch_block
    vmem_limit = int(min(48 << 20, max(32 << 20, _vmem_estimate(batch_block))))

    # TODO(synk): on v7x, consider pltpu.CORE_PARALLEL (or pl.core_map) on the
    # batch grid axis when nb >= 2 to guarantee dual-TensorCore sharding.
    return pl.pallas_call(
        _value_rnn_kernel,
        out_shape=jax.ShapeDtypeStruct((B, 1), jnp.float32),
        grid_spec=pltpu.PrefetchScalarGridSpec(
            num_scalar_prefetch=0,
            grid=(nb,),
            in_specs=[
                pl.BlockSpec((batch_block, T, I), lambda b: (b, 0, 0)),  # x tile (bf16)
                pl.BlockSpec((I, 4 * H), lambda b: (0, 0)),              # W_ih^T (perm)
                pl.BlockSpec((H, 4 * H), lambda b: (0, 0)),              # W_hh^T (perm)
                pl.BlockSpec((1, 4 * H), lambda b: (0, 0)),              # b_ih+b_hh (perm)
                pl.BlockSpec((1, H), lambda b: (0, 0)),                  # fc weight row
                pl.BlockSpec((1, 1), lambda b: (0, 0)),                  # fc bias
            ],
            out_specs=pl.BlockSpec((batch_block, 1), lambda b: (b, 0)),
        ),
        compiler_params=pltpu.CompilerParams(
            dimension_semantics=("parallel",),
            vmem_limit_bytes=vmem_limit),
    )(x, wih_t, whh_t, bias, fc_w, fc_b)


# ----------------------------------------------------------------------------
# Deterministic parameter construction (mirrors the PyTorch __init__ inits).
# ----------------------------------------------------------------------------
def make_params(key, input_size, hidden_size):
    k1, k2, k3, k4, k5, k6 = jax.random.split(key, 6)
    H, I = hidden_size, input_size

    def xavier_uniform(k, shape, gain):
        fan_out, fan_in = shape
        a = gain * np.sqrt(6.0 / (fan_in + fan_out))
        return jax.random.uniform(k, shape, jnp.float32, -a, a)

    def orthogonal(k, shape, gain):
        m = jax.random.normal(k, shape, jnp.float32)
        q, r = jnp.linalg.qr(m)
        q = q * jnp.sign(jnp.diag(r))
        return gain * q

    bound = 1.0 / np.sqrt(H)
    return {
        "w_ih": xavier_uniform(k1, (4 * H, I), gain=0.1),     # nn.init.xavier_uniform_
        "w_hh": orthogonal(k2, (4 * H, H), gain=0.1),         # nn.init.orthogonal_
        "b_ih": jax.random.uniform(k3, (4 * H,), jnp.float32, -bound, bound),
        "b_hh": jax.random.uniform(k4, (4 * H,), jnp.float32, -bound, bound),
        "fc_w": xavier_uniform(k5, (1, H), gain=0.01),
        "fc_b": jax.random.uniform(k6, (1,), jnp.float32, -bound, bound),
    }


def value_rnn_reference(state, params):
    """Pure-JAX f32 reference (matches PyTorch nn.LSTM semantics, h0=c0=0)."""
    B, T, A, F = state.shape
    I = A * F
    H = params["w_hh"].shape[1]
    x = state.reshape(B, T, I)
    h = jnp.zeros((B, H), jnp.float32)
    c = jnp.zeros((B, H), jnp.float32)
    for t in range(T):
        g = (x[:, t] @ params["w_ih"].T + h @ params["w_hh"].T
             + params["b_ih"] + params["b_hh"])
        i_g = jax.nn.sigmoid(g[:, 0 * H:1 * H])
        f_g = jax.nn.sigmoid(g[:, 1 * H:2 * H])
        g_g = jnp.tanh(g[:, 2 * H:3 * H])
        o_g = jax.nn.sigmoid(g[:, 3 * H:4 * H])
        c = f_g * c + i_g * g_g
        h = o_g * jnp.tanh(c)
    last = jnp.maximum(h, 0.0)
    return last @ params["fc_w"].T + params["fc_b"]


if __name__ == "__main__":
    # Small shapes consistent with forward(): state[B, lookback, num_assets, num_factors]
    B, T, A, F = 2, 8, 4, 4       # input_size = A*F = 16
    H = 32                        # hidden_size (4H = 128 -> lane-exact gates)

    key = jax.random.PRNGKey(0)
    kp, kx = jax.random.split(key)
    params = make_params(kp, input_size=A * F, hidden_size=H)
    state = jax.random.normal(kx, (B, T, A, F), jnp.float32)

    value = value_rnn_forward(state, params)
    value = jax.block_until_ready(value)

    ref = value_rnn_reference(state, params)
    # Kernel uses bf16 matmul inputs (f32 accumulation / f32 recurrent state),
    # so compare against the f32 reference with a bf16-appropriate tolerance.
    np.testing.assert_allclose(np.asarray(value), np.asarray(ref),
                               rtol=2e-2, atol=2e-3)
    print("KERNEL_OK")
</pallas_src>

<mosaic_0001>
module attributes {stable_mosaic.version = 11 : i64} {
  func.func @_value_rnn_kernel(%arg0: i32, %arg1: memref<2x8x16xbf16, #tpu.memory_space<vmem>>, %arg2: memref<16x128xbf16, #tpu.memory_space<vmem>>, %arg3: memref<32x128xbf16, #tpu.memory_space<vmem>>, %arg4: memref<1x128xf32, #tpu.memory_space<vmem>>, %arg5: memref<1x32xf32, #tpu.memory_space<vmem>>, %arg6: memref<1x1xf32, #tpu.memory_space<vmem>>, %arg7: memref<2x1xf32, #tpu.memory_space<vmem>>) attributes {dimension_semantics = [#tpu.dimension_semantics<parallel>], iteration_bounds = array<i64: 1>, scalar_prefetch = 0 : i64, scratch_operands = 0 : i64, tpu.core_type = #tpu.core_type<tc>, window_params = [{transform_indices = @transform_0, window_bounds = array<i64: 2, 8, 16>}, {pipeline_mode = #tpu.pipeline_mode<synchronous>, transform_indices = @transform_1, window_bounds = array<i64: 16, 128>}, {pipeline_mode = #tpu.pipeline_mode<synchronous>, transform_indices = @transform_2, window_bounds = array<i64: 32, 128>}, {pipeline_mode = #tpu.pipeline_mode<synchronous>, transform_indices = @transform_3, window_bounds = array<i64: 1, 128>}, {pipeline_mode = #tpu.pipeline_mode<synchronous>, transform_indices = @transform_4, window_bounds = array<i64: 1, 32>}, {pipeline_mode = #tpu.pipeline_mode<synchronous>, transform_indices = @transform_5, window_bounds = array<i64: 1, 1>}, {transform_indices = @transform_6, window_bounds = array<i64: 2, 1>}]} {
    %c0 = arith.constant 0 : index
    %c0_0 = arith.constant 0 : index
    %c0_1 = arith.constant 0 : index
    %0 = vector.load %arg1[%c0, %c0_0, %c0_1] : memref<2x8x16xbf16, #tpu.memory_space<vmem>>, vector<2x8x16xbf16>
    %1 = vector.shape_cast %0 : vector<2x8x16xbf16> to vector<16x16xbf16>
    %c0_2 = arith.constant 0 : index
    %c0_3 = arith.constant 0 : index
    %2 = vector.load %arg2[%c0_2, %c0_3] : memref<16x128xbf16, #tpu.memory_space<vmem>>, vector<16x128xbf16>
    %cst = arith.constant dense<0.000000e+00> : vector<16x128xf32>
    %3 = tpu.matmul %1, %2, %cst {dimension_numbers = #tpu.dot_dimension_numbers<[1], [0], [0], [1], [0, 0, 1, 1], [], []>} : vector<16x16xbf16>, vector<16x128xbf16>, vector<16x128xf32> -> vector<16x128xf32>
    %c0_4 = arith.constant 0 : index
    %c0_5 = arith.constant 0 : index
    %4 = vector.load %arg4[%c0_4, %c0_5] : memref<1x128xf32, #tpu.memory_space<vmem>>, vector<1x128xf32>
    %5 = vector.broadcast %4 : vector<1x128xf32> to vector<16x128xf32>
    %6 = arith.addf %3, %5 : vector<16x128xf32>
    %7 = vector.shape_cast %6 : vector<16x128xf32> to vector<2x8x128xf32>
    %c0_6 = arith.constant 0 : index
    %c0_7 = arith.constant 0 : index
    %8 = vector.load %arg3[%c0_6, %c0_7] : memref<32x128xbf16, #tpu.memory_space<vmem>>, vector<32x128xbf16>
    %cst_8 = arith.constant 0.000000e+00 : f32
    %9 = vector.broadcast %cst_8 : f32 to vector<2x32xf32>
    %cst_9 = arith.constant 0.000000e+00 : f32
    %10 = vector.broadcast %cst_9 : f32 to vector<2x32xf32>
    %11 = vector.extract_strided_slice %7 {offsets = [0, 0, 0], sizes = [2, 1, 128], strides = [1, 1, 1]} : vector<2x8x128xf32> to vector<2x1x128xf32>
    %12 = vector.shape_cast %11 : vector<2x1x128xf32> to vector<2x128xf32>
    %13 = arith.truncf %9 : vector<2x32xf32> to vector<2x32xbf16>
    %cst_10 = arith.constant dense<0.000000e+00> : vector<2x128xf32>
    %14 = tpu.matmul %13, %8, %cst_10 {dimension_numbers = #tpu.dot_dimension_numbers<[1], [0], [0], [1], [0, 0, 1, 1], [], []>} : vector<2x32xbf16>, vector<32x128xbf16>, vector<2x128xf32> -> vector<2x128xf32>
    %15 = arith.addf %12, %14 : vector<2x128xf32>
    %16 = vector.extract_strided_slice %15 {offsets = [0, 0], sizes = [2, 96], strides = [1, 1]} : vector<2x128xf32> to vector<2x96xf32>
    %17 = arith.negf %16 : vector<2x96xf32>
    %18 = math.exp %17 : vector<2x96xf32>
    %cst_11 = arith.constant 1.000000e+00 : f32
    %19 = vector.broadcast %cst_11 : f32 to vector<2x96xf32>
    %20 = arith.addf %19, %18 : vector<2x96xf32>
    %21 = arith.divf %19, %20 : vector<2x96xf32>
    %22 = vector.extract_strided_slice %15 {offsets = [0, 96], sizes = [2, 32], strides = [1, 1]} : vector<2x128xf32> to vector<2x32xf32>
    %23 = math.tanh %22 : vector<2x32xf32>
    %24 = vector.extract_strided_slice %21 {offsets = [0, 0], sizes = [2, 32], strides = [1, 1]} : vector<2x96xf32> to vector<2x32xf32>
    %25 = vector.extract_strided_slice %21 {offsets = [0, 32], sizes = [2, 32], strides = [1, 1]} : vector<2x96xf32> to vector<2x32xf32>
    %26 = vector.extract_strided_slice %21 {offsets = [0, 64], sizes = [2, 32], strides = [1, 1]} : vector<2x96xf32> to vector<2x32xf32>
    %27 = arith.mulf %25, %10 : vector<2x32xf32>
    %28 = arith.mulf %24, %23 : vector<2x32xf32>
    %29 = arith.addf %27, %28 : vector<2x32xf32>
    %30 = math.tanh %29 : vector<2x32xf32>
    %31 = arith.mulf %26, %30 : vector<2x32xf32>
    %32 = vector.extract_strided_slice %7 {offsets = [0, 1, 0], sizes = [2, 1, 128], strides = [1, 1, 1]} : vector<2x8x128xf32> to vector<2x1x128xf32>
    %33 = vector.shape_cast %32 : vector<2x1x128xf32> to vector<2x128xf32>
    %34 = arith.truncf %31 : vector<2x32xf32> to vector<2x32xbf16>
    %cst_12 = arith.constant dense<0.000000e+00> : vector<2x128xf32>
    %35 = tpu.matmul %34, %8, %cst_12 {dimension_numbers = #tpu.dot_dimension_numbers<[1], [0], [0], [1], [0, 0, 1, 1], [], []>} : vector<2x32xbf16>, vector<32x128xbf16>, vector<2x128xf32> -> vector<2x128xf32>
    %36 = arith.addf %33, %35 : vector<2x128xf32>
    %37 = vector.extract_strided_slice %36 {offsets = [0, 0], sizes = [2, 96], strides = [1, 1]} : vector<2x128xf32> to vector<2x96xf32>
    %38 = arith.negf %37 : vector<2x96xf32>
    %39 = math.exp %38 : vector<2x96xf32>
    %cst_13 = arith.constant 1.000000e+00 : f32
    %40 = vector.broadcast %cst_13 : f32 to vector<2x96xf32>
    %41 = arith.addf %40, %39 : vector<2x96xf32>
    %42 = arith.divf %40, %41 : vector<2x96xf32>
    %43 = vector.extract_strided_slice %36 {offsets = [0, 96], sizes = [2, 32], strides = [1, 1]} : vector<2x128xf32> to vector<2x32xf32>
    %44 = math.tanh %43 : vector<2x32xf32>
    %45 = vector.extract_strided_slice %42 {offsets = [0, 0], sizes = [2, 32], strides = [1, 1]} : vector<2x96xf32> to vector<2x32xf32>
    %46 = vector.extract_strided_slice %42 {offsets = [0, 32], sizes = [2, 32], strides = [1, 1]} : vector<2x96xf32> to vector<2x32xf32>
    %47 = vector.extract_strided_slice %42 {offsets = [0, 64], sizes = [2, 32], strides = [1, 1]} : vector<2x96xf32> to vector<2x32xf32>
    %48 = arith.mulf %46, %29 : vector<2x32xf32>
    %49 = arith.mulf %45, %44 : vector<2x32xf32>
    %50 = arith.addf %48, %49 : vector<2x32xf32>
    %51 = math.tanh %50 : vector<2x32xf32>
    %52 = arith.mulf %47, %51 : vector<2x32xf32>
    %53 = vector.extract_strided_slice %7 {offsets = [0, 2, 0], sizes = [2, 1, 128], strides = [1, 1, 1]} : vector<2x8x128xf32> to vector<2x1x128xf32>
    %54 = vector.shape_cast %53 : vector<2x1x128xf32> to vector<2x128xf32>
    %55 = arith.truncf %52 : vector<2x32xf32> to vector<2x32xbf16>
    %cst_14 = arith.constant dense<0.000000e+00> : vector<2x128xf32>
    %56 = tpu.matmul %55, %8, %cst_14 {dimension_numbers = #tpu.dot_dimension_numbers<[1], [0], [0], [1], [0, 0, 1, 1], [], []>} : vector<2x32xbf16>, vector<32x128xbf16>, vector<2x128xf32> -> vector<2x128xf32>
    %57 = arith.addf %54, %56 : vector<2x128xf32>
    %58 = vector.extract_strided_slice %57 {offsets = [0, 0], sizes = [2, 96], strides = [1, 1]} : vector<2x128xf32> to vector<2x96xf32>
    %59 = arith.negf %58 : vector<2x96xf32>
    %60 = math.exp %59 : vector<2x96xf32>
    %cst_15 = arith.constant 1.000000e+00 : f32
    %61 = vector.broadcast %cst_15 : f32 to vector<2x96xf32>
    %62 = arith.addf %61, %60 : vector<2x96xf32>
    %63 = arith.divf %61, %62 : vector<2x96xf32>
    %64 = vector.extract_strided_slice %57 {offsets = [0, 96], sizes = [2, 32], strides = [1, 1]} : vector<2x128xf32> to vector<2x32xf32>
    %65 = math.tanh %64 : vector<2x32xf32>
    %66 = vector.extract_strided_slice %63 {offsets = [0, 0], sizes = [2, 32], strides = [1, 1]} : vector<2x96xf32> to vector<2x32xf32>
    %67 = vector.extract_strided_slice %63 {offsets = [0, 32], sizes = [2, 32], strides = [1, 1]} : vector<2x96xf32> to vector<2x32xf32>
    %68 = vector.extract_strided_slice %63 {offsets = [0, 64], sizes = [2, 32], strides = [1, 1]} : vector<2x96xf32> to vector<2x32xf32>
    %69 = arith.mulf %67, %50 : vector<2x32xf32>
    %70 = arith.mulf %66, %65 : vector<2x32xf32>
    %71 = arith.addf %69, %70 : vector<2x32xf32>
    %72 = math.tanh %71 : vector<2x32xf32>
    %73 = arith.mulf %68, %72 : vector<2x32xf32>
    %74 = vector.extract_strided_slice %7 {offsets = [0, 3, 0], sizes = [2, 1, 128], strides = [1, 1, 1]} : vector<2x8x128xf32> to vector<2x1x128xf32>
    %75 = vector.shape_cast %74 : vector<2x1x128xf32> to vector<2x128xf32>
    %76 = arith.truncf %73 : vector<2x32xf32> to vector<2x32xbf16>
    %cst_16 = arith.constant dense<0.000000e+00> : vector<2x128xf32>
    %77 = tpu.matmul %76, %8, %cst_16 {dimension_numbers = #tpu.dot_dimension_numbers<[1], [0], [0], [1], [0, 0, 1, 1], [], []>} : vector<2x32xbf16>, vector<32x128xbf16>, vector<2x128xf32> -> vector<2x128xf32>
    %78 = arith.addf %75, %77 : vector<2x128xf32>
    %79 = vector.extract_strided_slice %78 {offsets = [0, 0], sizes = [2, 96], strides = [1, 1]} : vector<2x128xf32> to vector<2x96xf32>
    %80 = arith.negf %79 : vector<2x96xf32>
    %81 = math.exp %80 : vector<2x96xf32>
    %cst_17 = arith.constant 1.000000e+00 : f32
    %82 = vector.broadcast %cst_17 : f32 to vector<2x96xf32>
    %83 = arith.addf %82, %81 : vector<2x96xf32>
    %84 = arith.divf %82, %83 : vector<2x96xf32>
    %85 = vector.extract_strided_slice %78 {offsets = [0, 96], sizes = [2, 32], strides = [1, 1]} : vector<2x128xf32> to vector<2x32xf32>
    %86 = math.tanh %85 : vector<2x32xf32>
    %87 = vector.extract_strided_slice %84 {offsets = [0, 0], sizes = [2, 32], strides = [1, 1]} : vector<2x96xf32> to vector<2x32xf32>
    %88 = vector.extract_strided_slice %84 {offsets = [0, 32], sizes = [2, 32], strides = [1, 1]} : vector<2x96xf32> to vector<2x32xf32>
    %89 = vector.extract_strided_slice %84 {offsets = [0, 64], sizes = [2, 32], strides = [1, 1]} : vector<2x96xf32> to vector<2x32xf32>
    %90 = arith.mulf %88, %71 : vector<2x32xf32>
    %91 = arith.mulf %87, %86 : vector<2x32xf32>
    %92 = arith.addf %90, %91 : vector<2x32xf32>
    %93 = math.tanh %92 : vector<2x32xf32>
    %94 = arith.mulf %89, %93 : vector<2x32xf32>
    %95 = vector.extract_strided_slice %7 {offsets = [0, 4, 0], sizes = [2, 1, 128], strides = [1, 1, 1]} : vector<2x8x128xf32> to vector<2x1x128xf32>
    %96 = vector.shape_cast %95 : vector<2x1x128xf32> to vector<2x128xf32>
    %97 = arith.truncf %94 : vector<2x32xf32> to vector<2x32xbf16>
    %cst_18 = arith.constant dense<0.000000e+00> : vector<2x128xf32>
    %98 = tpu.matmul %97, %8, %cst_18 {dimension_numbers = #tpu.dot_dimension_numbers<[1], [0], [0], [1], [0, 0, 1, 1], [], []>} : vector<2x32xbf16>, vector<32x128xbf16>, vector<2x128xf32> -> vector<2x128xf32>
    %99 = arith.addf %96, %98 : vector<2x128xf32>
    %100 = vector.extract_strided_slice %99 {offsets = [0, 0], sizes = [2, 96], strides = [1, 1]} : vector<2x128xf32> to vector<2x96xf32>
    %101 = arith.negf %100 : vector<2x96xf32>
    %102 = math.exp %101 : vector<2x96xf32>
    %cst_19 = arith.constant 1.000000e+00 : f32
    %103 = vector.broadcast %cst_19 : f32 to vector<2x96xf32>
    %104 = arith.addf %103, %102 : vector<2x96xf32>
    %105 = arith.divf %103, %104 : vector<2x96xf32>
    %106 = vector.extract_strided_slice %99 {offsets = [0, 96], sizes = [2, 32], strides = [1, 1]} : vector<2x128xf32> to vector<2x32xf32>
    %107 = math.tanh %106 : vector<2x32xf32>
    %108 = vector.extract_strided_slice %105 {offsets = [0, 0], sizes = [2, 32], strides = [1, 1]} : vector<2x96xf32> to vector<2x32xf32>
    %109 = vector.extract_strided_slice %105 {offsets = [0, 32], sizes = [2, 32], strides = [1, 1]} : vector<2x96xf32> to vector<2x32xf32>
    %110 = vector.extract_strided_slice %105 {offsets = [0, 64], sizes = [2, 32], strides = [1, 1]} : vector<2x96xf32> to vector<2x32xf32>
    %111 = arith.mulf %109, %92 : vector<2x32xf32>
    %112 = arith.mulf %108, %107 : vector<2x32xf32>
    %113 = arith.addf %111, %112 : vector<2x32xf32>
    %114 = math.tanh %113 : vector<2x32xf32>
    %115 = arith.mulf %110, %114 : vector<2x32xf32>
    %116 = vector.extract_strided_slice %7 {offsets = [0, 5, 0], sizes = [2, 1, 128], strides = [1, 1, 1]} : vector<2x8x128xf32> to vector<2x1x128xf32>
    %117 = vector.shape_cast %116 : vector<2x1x128xf32> to vector<2x128xf32>
    %118 = arith.truncf %115 : vector<2x32xf32> to vector<2x32xbf16>
    %cst_20 = arith.constant dense<0.000000e+00> : vector<2x128xf32>
    %119 = tpu.matmul %118, %8, %cst_20 {dimension_numbers = #tpu.dot_dimension_numbers<[1], [0], [0], [1], [0, 0, 1, 1], [], []>} : vector<2x32xbf16>, vector<32x128xbf16>, vector<2x128xf32> -> vector<2x128xf32>
    %120 = arith.addf %117, %119 : vector<2x128xf32>
    %121 = vector.extract_strided_slice %120 {offsets = [0, 0], sizes = [2, 96], strides = [1, 1]} : vector<2x128xf32> to vector<2x96xf32>
    %122 = arith.negf %121 : vector<2x96xf32>
    %123 = math.exp %122 : vector<2x96xf32>
    %cst_21 = arith.constant 1.000000e+00 : f32
    %124 = vector.broadcast %cst_21 : f32 to vector<2x96xf32>
    %125 = arith.addf %124, %123 : vector<2x96xf32>
    %126 = arith.divf %124, %125 : vector<2x96xf32>
    %127 = vector.extract_strided_slice %120 {offsets = [0, 96], sizes = [2, 32], strides = [1, 1]} : vector<2x128xf32> to vector<2x32xf32>
    %128 = math.tanh %127 : vector<2x32xf32>
    %129 = vector.extract_strided_slice %126 {offsets = [0, 0], sizes = [2, 32], strides = [1, 1]} : vector<2x96xf32> to vector<2x32xf32>
    %130 = vector.extract_strided_slice %126 {offsets = [0, 32], sizes = [2, 32], strides = [1, 1]} : vector<2x96xf32> to vector<2x32xf32>
    %131 = vector.extract_strided_slice %126 {offsets = [0, 64], sizes = [2, 32], strides = [1, 1]} : vector<2x96xf32> to vector<2x32xf32>
    %132 = arith.mulf %130, %113 : vector<2x32xf32>
    %133 = arith.mulf %129, %128 : vector<2x32xf32>
    %134 = arith.addf %132, %133 : vector<2x32xf32>
    %135 = math.tanh %134 : vector<2x32xf32>
    %136 = arith.mulf %131, %135 : vector<2x32xf32>
    %137 = vector.extract_strided_slice %7 {offsets = [0, 6, 0], sizes = [2, 1, 128], strides = [1, 1, 1]} : vector<2x8x128xf32> to vector<2x1x128xf32>
    %138 = vector.shape_cast %137 : vector<2x1x128xf32> to vector<2x128xf32>
    %139 = arith.truncf %136 : vector<2x32xf32> to vector<2x32xbf16>
    %cst_22 = arith.constant dense<0.000000e+00> : vector<2x128xf32>
    %140 = tpu.matmul %139, %8, %cst_22 {dimension_numbers = #tpu.dot_dimension_numbers<[1], [0], [0], [1], [0, 0, 1, 1], [], []>} : vector<2x32xbf16>, vector<32x128xbf16>, vector<2x128xf32> -> vector<2x128xf32>
    %141 = arith.addf %138, %140 : vector<2x128xf32>
    %142 = vector.extract_strided_slice %141 {offsets = [0, 0], sizes = [2, 96], strides = [1, 1]} : vector<2x128xf32> to vector<2x96xf32>
    %143 = arith.negf %142 : vector<2x96xf32>
    %144 = math.exp %143 : vector<2x96xf32>
    %cst_23 = arith.constant 1.000000e+00 : f32
    %145 = vector.broadcast %cst_23 : f32 to vector<2x96xf32>
    %146 = arith.addf %145, %144 : vector<2x96xf32>
    %147 = arith.divf %145, %146 : vector<2x96xf32>
    %148 = vector.extract_strided_slice %141 {offsets = [0, 96], sizes = [2, 32], strides = [1, 1]} : vector<2x128xf32> to vector<2x32xf32>
    %149 = math.tanh %148 : vector<2x32xf32>
    %150 = vector.extract_strided_slice %147 {offsets = [0, 0], sizes = [2, 32], strides = [1, 1]} : vector<2x96xf32> to vector<2x32xf32>
    %151 = vector.extract_strided_slice %147 {offsets = [0, 32], sizes = [2, 32], strides = [1, 1]} : vector<2x96xf32> to vector<2x32xf32>
    %152 = vector.extract_strided_slice %147 {offsets = [0, 64], sizes = [2, 32], strides = [1, 1]} : vector<2x96xf32> to vector<2x32xf32>
    %153 = arith.mulf %151, %134 : vector<2x32xf32>
    %154 = arith.mulf %150, %149 : vector<2x32xf32>
    %155 = arith.addf %153, %154 : vector<2x32xf32>
    %156 = math.tanh %155 : vector<2x32xf32>
    %157 = arith.mulf %152, %156 : vector<2x32xf32>
    %158 = vector.extract_strided_slice %7 {offsets = [0, 7, 0], sizes = [2, 1, 128], strides = [1, 1, 1]} : vector<2x8x128xf32> to vector<2x1x128xf32>
    %159 = vector.shape_cast %158 : vector<2x1x128xf32> to vector<2x128xf32>
    %160 = arith.truncf %157 : vector<2x32xf32> to vector<2x32xbf16>
    %cst_24 = arith.constant dense<0.000000e+00> : vector<2x128xf32>
    %161 = tpu.matmul %160, %8, %cst_24 {dimension_numbers = #tpu.dot_dimension_numbers<[1], [0], [0], [1], [0, 0, 1, 1], [], []>} : vector<2x32xbf16>, vector<32x128xbf16>, vector<2x128xf32> -> vector<2x128xf32>
    %162 = arith.addf %159, %161 : vector<2x128xf32>
    %163 = vector.extract_strided_slice %162 {offsets = [0, 0], sizes = [2, 96], strides = [1, 1]} : vector<2x128xf32> to vector<2x96xf32>
    %164 = arith.negf %163 : vector<2x96xf32>
    %165 = math.exp %164 : vector<2x96xf32>
    %cst_25 = arith.constant 1.000000e+00 : f32
    %166 = vector.broadcast %cst_25 : f32 to vector<2x96xf32>
    %167 = arith.addf %166, %165 : vector<2x96xf32>
    %168 = arith.divf %166, %167 : vector<2x96xf32>
    %169 = vector.extract_strided_slice %162 {offsets = [0, 96], sizes = [2, 32], strides = [1, 1]} : vector<2x128xf32> to vector<2x32xf32>
    %170 = math.tanh %169 : vector<2x32xf32>
    %171 = vector.extract_strided_slice %168 {offsets = [0, 0], sizes = [2, 32], strides = [1, 1]} : vector<2x96xf32> to vector<2x32xf32>
    %172 = vector.extract_strided_slice %168 {offsets = [0, 32], sizes = [2, 32], strides = [1, 1]} : vector<2x96xf32> to vector<2x32xf32>
    %173 = vector.extract_strided_slice %168 {offsets = [0, 64], sizes = [2, 32], strides = [1, 1]} : vector<2x96xf32> to vector<2x32xf32>
    %174 = arith.mulf %172, %155 : vector<2x32xf32>
    %175 = arith.mulf %171, %170 : vector<2x32xf32>
    %176 = arith.addf %174, %175 : vector<2x32xf32>
    %177 = math.tanh %176 : vector<2x32xf32>
    %178 = arith.mulf %173, %177 : vector<2x32xf32>
    %c0_26 = arith.constant 0 : index
    %c0_27 = arith.constant 0 : index
    %179 = vector.load %arg5[%c0_26, %c0_27] : memref<1x32xf32, #tpu.memory_space<vmem>>, vector<1x32xf32>
    %c0_28 = arith.constant 0 : index
    %c0_29 = arith.constant 0 : index
    %180 = vector.load %arg6[%c0_28, %c0_29] : memref<1x1xf32, #tpu.memory_space<vmem>>, vector<1x1xf32>
    %cst_30 = arith.constant 0.000000e+00 : f32
    %181 = vector.broadcast %cst_30 : f32 to vector<2x32xf32>
    %182 = arith.maximumf %178, %181 : vector<2x32xf32>
    %183 = vector.broadcast %179 : vector<1x32xf32> to vector<2x32xf32>
    %184 = arith.mulf %182, %183 : vector<2x32xf32>
    %cst_31 = arith.constant dense<0.000000e+00> : vector<2xf32>
    %185 = vector.multi_reduction <add>, %184, %cst_31 [1] : vector<2x32xf32> to vector<2xf32>
    %186 = vector.shape_cast %185 : vector<2xf32> to vector<2x1xf32>
    %187 = vector.broadcast %180 : vector<1x1xf32> to vector<2x1xf32>
    %188 = arith.addf %186, %187 : vector<2x1xf32>
    %c0_32 = arith.constant 0 : index
    %c0_33 = arith.constant 0 : index
    %189 = vector.load %arg7[%c0_32, %c0_33] : memref<2x1xf32, #tpu.memory_space<vmem>>, vector<2x1xf32>
    tpu.vector_store %arg7[%c0_32, %c0_33], %188 {strides = array<i32>} : memref<2x1xf32, #tpu.memory_space<vmem>>, vector<2x1xf32>,
    return
  }
  func.func @transform_0(%arg0: i32) -> (i32, i32, i32) {
    %c0_i32 = arith.constant 0 : i32
    %c0_i32_0 = arith.constant 0 : i32
    %c0_i32_1 = arith.constant 0 : i32
    return %arg0, %c0_i32, %c0_i32_0 : i32, i32, i32
  }
  func.func @transform_1(%arg0: i32) -> (i32, i32) {
    %c0_i32 = arith.constant 0 : i32
    %c0_i32_0 = arith.constant 0 : i32
    %c0_i32_1 = arith.constant 0 : i32
    return %c0_i32, %c0_i32_0 : i32, i32
  }
  func.func @transform_2(%arg0: i32) -> (i32, i32) {
    %c0_i32 = arith.constant 0 : i32
    %c0_i32_0 = arith.constant 0 : i32
    %c0_i32_1 = arith.constant 0 : i32
    return %c0_i32, %c0_i32_0 : i32, i32
  }
  func.func @transform_3(%arg0: i32) -> (i32, i32) {
    %c0_i32 = arith.constant 0 : i32
    %c0_i32_0 = arith.constant 0 : i32
    %c0_i32_1 = arith.constant 0 : i32
    return %c0_i32, %c0_i32_0 : i32, i32
  }
  func.func @transform_4(%arg0: i32) -> (i32, i32) {
    %c0_i32 = arith.constant 0 : i32
    %c0_i32_0 = arith.constant 0 : i32
    %c0_i32_1 = arith.constant 0 : i32
    return %c0_i32, %c0_i32_0 : i32, i32
  }
  func.func @transform_5(%arg0: i32) -> (i32, i32) {
    %c0_i32 = arith.constant 0 : i32
    %c0_i32_0 = arith.constant 0 : i32
    %c0_i32_1 = arith.constant 0 : i32
    return %c0_i32, %c0_i32_0 : i32, i32
  }
  func.func @transform_6(%arg0: i32) -> (i32, i32) {
    %c0_i32 = arith.constant 0 : i32
    %c0_i32_0 = arith.constant 0 : i32
    return %arg0, %c0_i32 : i32, i32
  }
}

</mosaic_0001>

<llo_original>
// kernel: tpu_custom_call.1
$region0: #{tpu_custom_call.1}
  #allocation0 [shape = 'u32[]', space=smem, size = 0x4, offset = 0x4, fixed_abs, tag = 'smem constant byte address 0x4 - core index']
  #allocation1 [shape = 'u32[144,128]{1,0:T(1,128)}', space=vmem, size = 0x12000, scoped, tag = 'internal scratch']
  #allocation2 [shape = 'f32[1,1]{1,0:T(1,128)S(1)}', space=vmem, size = 0x200, scoped, tag = 'scoped memory for tpu_custom_call.1']
  %s0 = inlined_call_operand.hbm [shape: bf16[2,8,16], index: 0, kind: input, shape index: {}]
  %s1 = inlined_call_operand.hbm [shape: bf16[16,128], index: 1, kind: input, shape index: {}]
  %s2 = inlined_call_operand.hbm [shape: bf16[32,128], index: 2, kind: input, shape index: {}]
  %s3 = inlined_call_operand.vmem [shape: f32[1,128], index: 3, kind: input, shape index: {}]
  %s4 = inlined_call_operand.vmem [shape: f32[1,32], index: 4, kind: input, shape index: {}]
  %s5 = inlined_call_operand.<no memory space> [shape: f32[1,1], index: 5, kind: input, shape index: {}]
  %s6 = inlined_call_operand.vmem [shape: f32[2,1], index: 6, kind: output, shape index: {}]
  %s7 = sld [smem:[#allocation0]]
  $region46: #{tpu_custom_call.1} parent=0
    _
  %s9 = ssub.s32 1, %s7
  %s10 = scalar_select 0, %s9, %s7
  %v11 = vstv %s5
  %12 = vst [vmem:[#allocation2] sm:$0x1] %v11
  $region1: #{tpu_custom_call.1} parent=0
    #allocation3 [shape = 'u8[4096]{0}', space=vmem, size = 0x1000, scoped, tag = 'input window, operand 0, single buffered']
    #allocation4 [shape = 's32[1]{0}', space=sflag, size = 0x4, scoped, tag = 'scoped memory for tpu_custom_call.1']
    #allocation5 [shape = 'u8[4096]{0}', space=vmem, size = 0x1000, scoped, tag = 'input window, operand 1, single buffered']
    #allocation6 [shape = 's32[1]{0}', space=sflag, size = 0x4, scoped, tag = 'scoped memory for tpu_custom_call.1']
    #allocation7 [shape = 'u8[8192]{0}', space=vmem, size = 0x2000, scoped, tag = 'input window, operand 2, single buffered']
    %13 = vsyncpa [#allocation4], 0
    %14 = vsyncpa [#allocation6], 0
    // Predicated region
    $region2: #{tpu_custom_call.1} parent=1 // pred_check
      _
    $region3: #{tpu_custom_call.1} parent=1 // pred_check_branch
      %16 = sbr.rel (0) target = $region5
    $region4: #{tpu_custom_call.1} parent=1 // pred_region
      %s18 = ssub.s32 128, 128
      %19 = vsyncadd [#allocation4], %s18
      %s20 = sshll.u32 [#allocation3], 4
      %s21 = int_to_ptr.vmem [resolvable:$true] %s20
      %26 = dma.hbm_to_vmem [thread:$0]  %s0, 128, %s21, [#allocation4], 64, 64, 4
    $region5: #{tpu_custom_call.1} parent=1 // pred_fallthru
      _
    // Predicated region
    $region6: #{tpu_custom_call.1} parent=1 // pred_check
      _
    $region7: #{tpu_custom_call.1} parent=1 // pred_check_branch
      %28 = sbr.rel (0) target = $region9
    $region8: #{tpu_custom_call.1} parent=1 // pred_region
      %s30 = ssub.s32 128, 128
      %31 = vsyncadd [#allocation6], %s30
      %s32 = sshll.u32 [#allocation5], 4
      %s33 = int_to_ptr.vmem [resolvable:$true] %s32
      %38 = dma.hbm_to_vmem [thread:$0]  %s1, 128, %s33, [#allocation6], 64, 64, 4
    $region9: #{tpu_custom_call.1} parent=1 // pred_fallthru
      _
    // Predicated region
    $region10: #{tpu_custom_call.1} parent=1 // pred_check
      _
    $region11: #{tpu_custom_call.1} parent=1 // pred_check_branch
      %40 = sbr.rel (0) target = $region13
    $region12: #{tpu_custom_call.1} parent=1 // pred_region
      %s42 = ssub.s32 256, 256
      %43 = vsyncadd [#allocation6], %s42
      %s44 = sshll.u32 [#allocation7], 4
      %s45 = int_to_ptr.vmem [resolvable:$true] %s44
      %50 = dma.hbm_to_vmem [thread:$0]  %s2, 256, %s45, [#allocation6], 64, 64, 4
    $region13: #{tpu_custom_call.1} parent=1 // pred_fallthru
      _
    // Predicated region
    $region14: #{tpu_custom_call.1} parent=1 // pred_check
      _
    $region15: #{tpu_custom_call.1} parent=1 // pred_check_branch
      %52 = sbr.rel (0) target = $region17
    $region16: #{tpu_custom_call.1} parent=1 // pred_region
      _
    $region17: #{tpu_custom_call.1} parent=1 // pred_fallthru
      _
    // Predicated region
    $region18: #{tpu_custom_call.1} parent=1 // pred_check
      _
    $region19: #{tpu_custom_call.1} parent=1 // pred_check_branch
      %54 = sbr.rel (0) target = $region21
    $region20: #{tpu_custom_call.1} parent=1 // pred_region
      _
    $region21: #{tpu_custom_call.1} parent=1 // pred_fallthru
      _
    // Predicated region
    $region22: #{tpu_custom_call.1} parent=1 // pred_check
      _
    $region23: #{tpu_custom_call.1} parent=1 // pred_check_branch
      %56 = sbr.rel (0) target = $region25
    $region24: #{tpu_custom_call.1} parent=1 // pred_region
      _
    $region25: #{tpu_custom_call.1} parent=1 // pred_fallthru
      _
    // Predicated region
    $region26: #{tpu_custom_call.1} parent=1 // pred_check
      _
    $region27: #{tpu_custom_call.1} parent=1 // pred_check_branch
      %58 = sbr.rel (0) target = $region29
    $region28: #{tpu_custom_call.1} parent=1 // pred_region
      %59 = dma.done [#allocation4], 128
    $region29: #{tpu_custom_call.1} parent=1 // pred_fallthru
      _
    // Predicated region
    $region30: #{tpu_custom_call.1} parent=1 // pred_check
      _
    $region31: #{tpu_custom_call.1} parent=1 // pred_check_branch
      %61 = sbr.rel (0) target = $region33
    $region32: #{tpu_custom_call.1} parent=1 // pred_region
      %62 = dma.done [#allocation6], 128
    $region33: #{tpu_custom_call.1} parent=1 // pred_fallthru
      _
    // Predicated region
    $region34: #{tpu_custom_call.1} parent=1 // pred_check
      _
    $region35: #{tpu_custom_call.1} parent=1 // pred_check_branch
      %64 = sbr.rel (0) target = $region37
    $region36: #{tpu_custom_call.1} parent=1 // pred_region
      %65 = dma.done [#allocation6], 256
    $region37: #{tpu_custom_call.1} parent=1 // pred_fallthru
      _
    %v67 = vld [vmem:[#allocation3] sm:$0xf]
    %v68 = vld [vmem:[#allocation3 + $0x4] sm:$0xf]
    %v69 = vld [vmem:[#allocation5] sm:$0xf]
    %v70 = vld [vmem:[#allocation5 + $0x4] sm:$0xf]
    %v71 = vld [vmem:[%s3] sm:$0x1]
    %v73 = vlaneseq
    %v74 = vshrl.u32 %v73, 7
    %v75 = vsub.s32 0, %v74
    %v76 = vrot.slane %v71, %v75
    %v80 = vunpack.c.l.b16 %v67
    %v81 = vunpack.c.l.b16 %v68
    %v82 = vpack.c.b16 %v81, %v80
    %v85 = vunpack.c.l.b16 %v69
    %v86 = vunpack.c.l.b16 %v70
    %v87 = vpack.c.b16 %v86, %v85
    %vm89 = vcmask 130048
    %v91 = vsel %vm89, %v82, 0
    %93 = vmatprep.subr.bf16.mxu0 0
    %94 = vmatpush1.bf16.msra.mxu0 %v87
    %95 = vmatprep.subr.bf16.mxu0 0
    %96 = vmatpush1.bf16.msra.mxu0 0
    %97 = vmatprep.subr.bf16.mxu0 0
    %98 = vmatpush1.bf16.msra.mxu0 0
    %99 = vmatprep.subr.bf16.mxu0 0
    %100 = vmatpush1.bf16.msra.mxu0 0
    %101 = vmatprep.subr.bf16.mxu0 0
    %102 = vmatpush1.bf16.msra.mxu0 0
    %103 = vmatprep.subr.bf16.mxu0 0
    %104 = vmatpush1.bf16.msra.mxu0 0
    %105 = vmatprep.subr.bf16.mxu0 0
    %106 = vmatpush1.bf16.msra.mxu0 0
    %107 = vmatprep.subr.bf16.mxu0 0
    %108 = vmatpush1.bf16.msra.mxu0 0
    %109 = vmatprep.subr.bf16.mxu0 0
    %110 = vmatpush1.bf16.msra.mxu0 0
    %111 = vmatprep.subr.bf16.mxu0 0
    %112 = vmatpush1.bf16.msra.mxu0 0
    %113 = vmatprep.subr.bf16.mxu0 0
    %114 = vmatpush1.bf16.msra.mxu0 0
    %115 = vmatprep.subr.bf16.mxu0 0
    %116 = vmatpush1.bf16.msra.mxu0 0
    %117 = vmatprep.subr.bf16.mxu0 0
    %118 = vmatpush1.bf16.msra.mxu0 0
    %119 = vmatprep.subr.bf16.mxu0 0
    %120 = vmatpush1.bf16.msra.mxu0 0
    %121 = vmatprep.subr.bf16.mxu0 0
    %122 = vmatpush1.bf16.msra.mxu0 0
    %123 = vmatprep.subr.bf16.mxu0 0
    %124 = vmatpush1.bf16.msra.mxu0 0
    %125 = vmatprep.mubr.bf16.mxu0 0
    %126 = vmatmul.mubr.bf16.gmra.mrb[0].mxu0 %v91
    %v127 = vpop.f32.mrb[0].mxu0
    %v128 = vadd.f32 %v76, %v127
    %v129 = vpop.f32.mrb[0].mxu0
    %v130 = vpop.f32.mrb[0].mxu0
    %v131 = vadd.f32 %v76, %v130
    %v132 = vpop.f32.mrb[0].mxu0
    %133 = vdwg.mxu0
    %v134 = vld [vmem:[#allocation7] sm:$0xf]
    %v135 = vld [vmem:[#allocation7 + $0x4] sm:$0xf]
    %v136 = vld [vmem:[#allocation7 + $0x8] sm:$0xf]
    %v137 = vld [vmem:[#allocation7 + $0xc] sm:$0xf]
    %v142 = vunpack.c.l.b16 %v134
    %v143 = vunpack.c.l.b16 %v135
    %v144 = vunpack.c.l.b16 %v136
    %v145 = vunpack.c.l.b16 %v137
    %v146 = vpack.c.b16 %v143, %v142
    %v147 = vpack.c.b16 %v145, %v144
    %vm150 = vcmask 261120
    %v152 = vsel %vm150, 0, 0
    %154 = vmatprep.subr.bf16.mxu0 0
    %155 = vmatpush1.bf16.msra.mxu0 %v146
    %156 = vmatprep.subr.bf16.mxu0 0
    %157 = vmatpush1.bf16.msra.mxu0 %v147
    %158 = vmatprep.subr.bf16.mxu0 0
    %159 = vmatpush1.bf16.msra.mxu0 0
    %160 = vmatprep.subr.bf16.mxu0 0
    %161 = vmatpush1.bf16.msra.mxu0 0
    %162 = vmatprep.subr.bf16.mxu0 0
    %163 = vmatpush1.bf16.msra.mxu0 0
    %164 = vmatprep.subr.bf16.mxu0 0
    %165 = vmatpush1.bf16.msra.mxu0 0
    %166 = vmatprep.subr.bf16.mxu0 0
    %167 = vmatpush1.bf16.msra.mxu0 0
    %168 = vmatprep.subr.bf16.mxu0 0
    %169 = vmatpush1.bf16.msra.mxu0 0
    %170 = vmatprep.subr.bf16.mxu0 0
    %171 = vmatpush1.bf16.msra.mxu0 0
    %172 = vmatprep.subr.bf16.mxu0 0
    %173 = vmatpush1.bf16.msra.mxu0 0
    %174 = vmatprep.subr.bf16.mxu0 0
    %175 = vmatpush1.bf16.msra.mxu0 0
    %176 = vmatprep.subr.bf16.mxu0 0
    %177 = vmatpush1.bf16.msra.mxu0 0
    %178 = vmatprep.subr.bf16.mxu0 0
    %179 = vmatpush1.bf16.msra.mxu0 0
    %180 = vmatprep.subr.bf16.mxu0 0
    %181 = vmatpush1.bf16.msra.mxu0 0
    %182 = vmatprep.subr.bf16.mxu0 0
    %183 = vmatpush1.bf16.msra.mxu0 0
    %184 = vmatprep.subr.bf16.mxu0 0
    %185 = vmatpush1.bf16.msra.mxu0 0
    %186 = vmatprep.mubr.bf16.mxu0 0
    %187 = vmatmul.mubr.bf16.gmra.mrb[0].mxu0 %v152
    %v188 = vpop.f32.mrb[0].mxu0
    %v189 = vadd.f32 0.0, %v188
    %v190 = vpop.f32.mrb[0].mxu0
    %v191 = vpop.f32.mrb[0].mxu0
    %v192 = vpop.f32.mrb[0].mxu0
    %193 = vdwg.mxu0
    %v195 = vrot.slane %v189, 1
    %v198 = vadd.f32 %v128, %v189
    %v199 = vadd.f32 %v131, %v195
    %v200 = vxor.u32 %v198, 2147483648
    %v201 = vxor.u32 %v199, 2147483648
    %v202 = vmul.f32 %v200, 1.442695
    %v203 = vpow.pop %v202
    %v204 = vmul.f32 %v201, 1.442695
    %v205 = vpow.pop %v204
    %v206 = vadd.f32 %v203, 1.0
    %v207 = vadd.f32 %v205, 1.0
    %v208 = vrcp.pop %v206
    %v209 = vmul.f32 1.0, %v208
    %v210 = vrcp.pop %v207
    %v211 = vmul.f32 1.0, %v210
    %v212 = vtanh.pop %v198
    %v213 = vtanh.pop %v199
    %v214 = vmul.f32 %v209, 0.0
    %v215 = vmul.f32 %v211, 0.0
    %218 = vrot.lane.b32.xlu0 %v212, 32
    %v219 = vpop.permute.xlu0 %218
    %220 = vrot.lane.b32.xlu0 %v213, 32
    %v221 = vpop.permute.xlu0 %220
    %v224 = vmul.f32 %v209, %v219
    %v225 = vmul.f32 %v211, %v221
    %228 = vrot.lane.b32.xlu0 %v224, 32
    %v229 = vpop.permute.xlu0 %228
    %230 = vrot.lane.b32.xlu0 %v225, 32
    %v231 = vpop.permute.xlu0 %230
    %v234 = vadd.f32 %v214, %v229
    %v235 = vadd.f32 %v215, %v231
    %v236 = vtanh.pop %v234
    %v237 = vtanh.pop %v235
    %240 = vrot.lane.b32.xlu0 %v236, 32
    %v241 = vpop.permute.xlu0 %240
    %242 = vrot.lane.b32.xlu0 %v237, 32
    %v243 = vpop.permute.xlu0 %242
    %v246 = vmul.f32 %v209, %v241
    %v247 = vmul.f32 %v211, %v243
    %v248 = vpack.c.bf16 %v246, %v246
    %v249 = vpack.c.bf16 %v247, %v247
    %v252 = vunpack.c.l.b16 %v248
    %v253 = vunpack.c.l.b16 %v249
    %v254 = vrot.slane %v253, 7
    %vm255 = vcmask 1041409
    %v256 = vsel %vm255, %v254, %v252
    %v257 = vpack.c.b16 %v256, %v256
    %258 = vrot.lane.b32.xlu0 %v257, 64
    %v259 = vpop.permute.xlu0 %258
    %v261 = vsel %vm150, %v259, 0
    %263 = vmatprep.subr.bf16.mxu0 0
    %264 = vmatpush1.bf16.msra.mxu0 %v146
    %265 = vmatprep.subr.bf16.mxu0 0
    %266 = vmatpush1.bf16.msra.mxu0 %v147
    %267 = vmatprep.subr.bf16.mxu0 0
    %268 = vmatpush1.bf16.msra.mxu0 0
    %269 = vmatprep.subr.bf16.mxu0 0
    %270 = vmatpush1.bf16.msra.mxu0 0
    %271 = vmatprep.subr.bf16.mxu0 0
    %272 = vmatpush1.bf16.msra.mxu0 0
    %273 = vmatprep.subr.bf16.mxu0 0
    %274 = vmatpush1.bf16.msra.mxu0 0
    %275 = vmatprep.subr.bf16.mxu0 0
    %276 = vmatpush1.bf16.msra.mxu0 0
    %277 = vmatprep.subr.bf16.mxu0 0
    %278 = vmatpush1.bf16.msra.mxu0 0
    %279 = vmatprep.subr.bf16.mxu0 0
    %280 = vmatpush1.bf16.msra.mxu0 0
    %281 = vmatprep.subr.bf16.mxu0 0
    %282 = vmatpush1.bf16.msra.mxu0 0
    %283 = vmatprep.subr.bf16.mxu0 0
    %284 = vmatpush1.bf16.msra.mxu0 0
    %285 = vmatprep.subr.bf16.mxu0 0
    %286 = vmatpush1.bf16.msra.mxu0 0
    %287 = vmatprep.subr.bf16.mxu0 0
    %288 = vmatpush1.bf16.msra.mxu0 0
    %289 = vmatprep.subr.bf16.mxu0 0
    %290 = vmatpush1.bf16.msra.mxu0 0
    %291 = vmatprep.subr.bf16.mxu0 0
    %292 = vmatpush1.bf16.msra.mxu0 0
    %293 = vmatprep.subr.bf16.mxu0 0
    %294 = vmatpush1.bf16.msra.mxu0 0
    %295 = vmatprep.mubr.bf16.mxu0 0
    %296 = vmatmul.mubr.bf16.gmra.mrb[0].mxu0 %v261
    %v297 = vpop.f32.mrb[0].mxu0
    %v298 = vadd.f32 0.0, %v297
    %v299 = vpop.f32.mrb[0].mxu0
    %v300 = vpop.f32.mrb[0].mxu0
    %v301 = vpop.f32.mrb[0].mxu0
    %302 = vdwg.mxu0
    %v304 = vrot.slane %v298, 7
    %v307 = vadd.f32 %v128, %v304
    %v308 = vadd.f32 %v131, %v298
    %v309 = vxor.u32 %v307, 2147483648
    %v310 = vxor.u32 %v308, 2147483648
    %v311 = vmul.f32 %v309, 1.442695
    %v312 = vpow.pop %v311
    %v313 = vmul.f32 %v310, 1.442695
    %v314 = vpow.pop %v313
    %v315 = vadd.f32 %v312, 1.0
    %v316 = vadd.f32 %v314, 1.0
    %v317 = vrcp.pop %v315
    %v318 = vmul.f32 1.0, %v317
    %v319 = vrcp.pop %v316
    %v320 = vmul.f32 1.0, %v319
    %v321 = vtanh.pop %v307
    %v322 = vtanh.pop %v308
    %v325 = vrot.slane %v234, 7
    %v326 = vrot.slane %v235, 7
    %v329 = vmul.f32 %v318, %v325
    %v330 = vmul.f32 %v320, %v326
    %333 = vrot.lane.b32.xlu0 %v321, 32
    %v334 = vpop.permute.xlu0 %333
    %335 = vrot.lane.b32.xlu0 %v322, 32
    %v336 = vpop.permute.xlu0 %335
    %v339 = vmul.f32 %v318, %v334
    %v340 = vmul.f32 %v320, %v336
    %343 = vrot.lane.b32.xlu0 %v339, 32
    %v344 = vpop.permute.xlu0 %343
    %345 = vrot.lane.b32.xlu0 %v340, 32
    %v346 = vpop.permute.xlu0 %345
    %v349 = vadd.f32 %v329, %v344
    %v350 = vadd.f32 %v330, %v346
    %v351 = vtanh.pop %v349
    %v352 = vtanh.pop %v350
    %355 = vrot.lane.b32.xlu0 %v351, 32
    %v356 = vpop.permute.xlu0 %355
    %357 = vrot.lane.b32.xlu0 %v352, 32
    %v358 = vpop.permute.xlu0 %357
    %v361 = vmul.f32 %v318, %v356
    %v362 = vmul.f32 %v320, %v358
    %v363 = vpack.c.bf16 %v361, %v361
    %v364 = vpack.c.bf16 %v362, %v362
    %v367 = vunpack.c.l.b16 %v363
    %v368 = vunpack.c.l.b16 %v364
    %v369 = vrot.slane %v367, 1
    %v370 = vsel %vm255, %v368, %v369
    %v371 = vpack.c.b16 %v370, %v370
    %372 = vrot.lane.b32.xlu0 %v371, 64
    %v373 = vpop.permute.xlu0 %372
    %v375 = vsel %vm150, %v373, 0
    %377 = vmatprep.subr.bf16.mxu0 0
    %378 = vmatpush1.bf16.msra.mxu0 %v146
    %379 = vmatprep.subr.bf16.mxu0 0
    %380 = vmatpush1.bf16.msra.mxu0 %v147
    %381 = vmatprep.subr.bf16.mxu0 0
    %382 = vmatpush1.bf16.msra.mxu0 0
    %383 = vmatprep.subr.bf16.mxu0 0
    %384 = vmatpush1.bf16.msra.mxu0 0
    %385 = vmatprep.subr.bf16.mxu0 0
    %386 = vmatpush1.bf16.msra.mxu0 0
    %387 = vmatprep.subr.bf16.mxu0 0
    %388 = vmatpush1.bf16.msra.mxu0 0
    %389 = vmatprep.subr.bf16.mxu0 0
    %390 = vmatpush1.bf16.msra.mxu0 0
    %391 = vmatprep.subr.bf16.mxu0 0
    %392 = vmatpush1.bf16.msra.mxu0 0
    %393 = vmatprep.subr.bf16.mxu0 0
    %394 = vmatpush1.bf16.msra.mxu0 0
    %395 = vmatprep.subr.bf16.mxu0 0
    %396 = vmatpush1.bf16.msra.mxu0 0
    %397 = vmatprep.subr.bf16.mxu0 0
    %398 = vmatpush1.bf16.msra.mxu0 0
    %399 = vmatprep.subr.bf16.mxu0 0
    %400 = vmatpush1.bf16.msra.mxu0 0
    %401 = vmatprep.subr.bf16.mxu0 0
    %402 = vmatpush1.bf16.msra.mxu0 0
    %403 = vmatprep.subr.bf16.mxu0 0
    %404 = vmatpush1.bf16.msra.mxu0 0
    %405 = vmatprep.subr.bf16.mxu0 0
    %406 = vmatpush1.bf16.msra.mxu0 0
    %407 = vmatprep.subr.bf16.mxu0 0
    %408 = vmatpush1.bf16.msra.mxu0 0
    %409 = vmatprep.mubr.bf16.mxu0 0
    %410 = vmatmul.mubr.bf16.gmra.mrb[0].mxu0 %v375
    %v411 = vpop.f32.mrb[0].mxu0
    %v412 = vadd.f32 0.0, %v411
    %v413 = vpop.f32.mrb[0].mxu0
    %v414 = vpop.f32.mrb[0].mxu0
    %v415 = vpop.f32.mrb[0].mxu0
    %416 = vdwg.mxu0
    %v418 = vrot.slane %v412, 6
    %v419 = vrot.slane %v412, 7
    %v422 = vadd.f32 %v128, %v418
    %v423 = vadd.f32 %v131, %v419
    %v424 = vxor.u32 %v422, 2147483648
    %v425 = vxor.u32 %v423, 2147483648
    %v426 = vmul.f32 %v424, 1.442695
    %v427 = vpow.pop %v426
    %v428 = vmul.f32 %v425, 1.442695
    %v429 = vpow.pop %v428
    %v430 = vadd.f32 %v427, 1.0
    %v431 = vadd.f32 %v429, 1.0
    %v432 = vrcp.pop %v430
    %v433 = vmul.f32 1.0, %v432
    %v434 = vrcp.pop %v431
    %v435 = vmul.f32 1.0, %v434
    %v436 = vtanh.pop %v422
    %v437 = vtanh.pop %v423
    %v440 = vrot.slane %v349, 7
    %v441 = vrot.slane %v350, 7
    %v444 = vmul.f32 %v433, %v440
    %v445 = vmul.f32 %v435, %v441
    %448 = vrot.lane.b32.xlu0 %v436, 32
    %v449 = vpop.permute.xlu0 %448
    %450 = vrot.lane.b32.xlu0 %v437, 32
    %v451 = vpop.permute.xlu0 %450
    %v454 = vmul.f32 %v433, %v449
    %v455 = vmul.f32 %v435, %v451
    %458 = vrot.lane.b32.xlu0 %v454, 32
    %v459 = vpop.permute.xlu0 %458
    %460 = vrot.lane.b32.xlu0 %v455, 32
    %v461 = vpop.permute.xlu0 %460
    %v464 = vadd.f32 %v444, %v459
    %v465 = vadd.f32 %v445, %v461
    %v466 = vtanh.pop %v464
    %v467 = vtanh.pop %v465
    %470 = vrot.lane.b32.xlu0 %v466, 32
    %v471 = vpop.permute.xlu0 %470
    %472 = vrot.lane.b32.xlu0 %v467, 32
    %v473 = vpop.permute.xlu0 %472
    %v476 = vmul.f32 %v433, %v471
    %v477 = vmul.f32 %v435, %v473
    %v478 = vpack.c.bf16 %v476, %v476
    %v479 = vpack.c.bf16 %v477, %v477
    %v482 = vunpack.c.l.b16 %v478
    %v483 = vunpack.c.l.b16 %v479
    %v484 = vrot.slane %v482, 2
    %v485 = vrot.slane %v483, 1
    %v486 = vsel %vm255, %v485, %v484
    %v487 = vpack.c.b16 %v486, %v486
    %488 = vrot.lane.b32.xlu0 %v487, 64
    %v489 = vpop.permute.xlu0 %488
    %v491 = vsel %vm150, %v489, 0
    %493 = vmatprep.subr.bf16.mxu0 0
    %494 = vmatpush1.bf16.msra.mxu0 %v146
    %495 = vmatprep.subr.bf16.mxu0 0
    %496 = vmatpush1.bf16.msra.mxu0 %v147
    %497 = vmatprep.subr.bf16.mxu0 0
    %498 = vmatpush1.bf16.msra.mxu0 0
    %499 = vmatprep.subr.bf16.mxu0 0
    %500 = vmatpush1.bf16.msra.mxu0 0
    %501 = vmatprep.subr.bf16.mxu0 0
    %502 = vmatpush1.bf16.msra.mxu0 0
    %503 = vmatprep.subr.bf16.mxu0 0
    %504 = vmatpush1.bf16.msra.mxu0 0
    %505 = vmatprep.subr.bf16.mxu0 0
    %506 = vmatpush1.bf16.msra.mxu0 0
    %507 = vmatprep.subr.bf16.mxu0 0
    %508 = vmatpush1.bf16.msra.mxu0 0
    %509 = vmatprep.subr.bf16.mxu0 0
    %510 = vmatpush1.bf16.msra.mxu0 0
    %511 = vmatprep.subr.bf16.mxu0 0
    %512 = vmatpush1.bf16.msra.mxu0 0
    %513 = vmatprep.subr.bf16.mxu0 0
    %514 = vmatpush1.bf16.msra.mxu0 0
    %515 = vmatprep.subr.bf16.mxu0 0
    %516 = vmatpush1.bf16.msra.mxu0 0
    %517 = vmatprep.subr.bf16.mxu0 0
    %518 = vmatpush1.bf16.msra.mxu0 0
    %519 = vmatprep.subr.bf16.mxu0 0
    %520 = vmatpush1.bf16.msra.mxu0 0
    %521 = vmatprep.subr.bf16.mxu0 0
    %522 = vmatpush1.bf16.msra.mxu0 0
    %523 = vmatprep.subr.bf16.mxu0 0
    %524 = vmatpush1.bf16.msra.mxu0 0
    %525 = vmatprep.mubr.bf16.mxu0 0
    %526 = vmatmul.mubr.bf16.gmra.mrb[0].mxu0 %v491
    %v527 = vpop.f32.mrb[0].mxu0
    %v528 = vadd.f32 0.0, %v527
    %v529 = vpop.f32.mrb[0].mxu0
    %v530 = vpop.f32.mrb[0].mxu0
    %v531 = vpop.f32.mrb[0].mxu0
    %532 = vdwg.mxu0
    %v534 = vrot.slane %v528, 5
    %v535 = vrot.slane %v528, 6
    %v538 = vadd.f32 %v128, %v534
    %v539 = vadd.f32 %v131, %v535
    %v540 = vxor.u32 %v538, 2147483648
    %v541 = vxor.u32 %v539, 2147483648
    %v542 = vmul.f32 %v540, 1.442695
    %v543 = vpow.pop %v542
    %v544 = vmul.f32 %v541, 1.442695
    %v545 = vpow.pop %v544
    %v546 = vadd.f32 %v543, 1.0
    %v547 = vadd.f32 %v545, 1.0
    %v548 = vrcp.pop %v546
    %v549 = vmul.f32 1.0, %v548
    %v550 = vrcp.pop %v547
    %v551 = vmul.f32 1.0, %v550
    %v552 = vtanh.pop %v538
    %v553 = vtanh.pop %v539
    %v556 = vrot.slane %v464, 7
    %v557 = vrot.slane %v465, 7
    %v560 = vmul.f32 %v549, %v556
    %v561 = vmul.f32 %v551, %v557
    %564 = vrot.lane.b32.xlu0 %v552, 32
    %v565 = vpop.permute.xlu0 %564
    %566 = vrot.lane.b32.xlu0 %v553, 32
    %v567 = vpop.permute.xlu0 %566
    %v570 = vmul.f32 %v549, %v565
    %v571 = vmul.f32 %v551, %v567
    %574 = vrot.lane.b32.xlu0 %v570, 32
    %v575 = vpop.permute.xlu0 %574
    %576 = vrot.lane.b32.xlu0 %v571, 32
    %v577 = vpop.permute.xlu0 %576
    %v580 = vadd.f32 %v560, %v575
    %v581 = vadd.f32 %v561, %v577
    %v582 = vtanh.pop %v580
    %v583 = vtanh.pop %v581
    %586 = vrot.lane.b32.xlu0 %v582, 32
    %v587 = vpop.permute.xlu0 %586
    %588 = vrot.lane.b32.xlu0 %v583, 32
    %v589 = vpop.permute.xlu0 %588
    %v592 = vmul.f32 %v549, %v587
    %v593 = vmul.f32 %v551, %v589
    %v594 = vpack.c.bf16 %v592, %v592
    %v595 = vpack.c.bf16 %v593, %v593
    %v598 = vunpack.c.l.b16 %v594
    %v599 = vunpack.c.l.b16 %v595
    %v600 = vrot.slane %v598, 3
    %v601 = vrot.slane %v599, 2
    %v602 = vsel %vm255, %v601, %v600
    %v603 = vpack.c.b16 %v602, %v602
    %604 = vrot.lane.b32.xlu0 %v603, 64
    %v605 = vpop.permute.xlu0 %604
    %v607 = vsel %vm150, %v605, 0
    %609 = vmatprep.subr.bf16.mxu0 0
    %610 = vmatpush1.bf16.msra.mxu0 %v146
    %611 = vmatprep.subr.bf16.mxu0 0
    %612 = vmatpush1.bf16.msra.mxu0 %v147
    %613 = vmatprep.subr.bf16.mxu0 0
    %614 = vmatpush1.bf16.msra.mxu0 0
    %615 = vmatprep.subr.bf16.mxu0 0
    %616 = vmatpush1.bf16.msra.mxu0 0
    %617 = vmatprep.subr.bf16.mxu0 0
    %618 = vmatpush1.bf16.msra.mxu0 0
    %619 = vmatprep.subr.bf16.mxu0 0
    %620 = vmatpush1.bf16.msra.mxu0 0
    %621 = vmatprep.subr.bf16.mxu0 0
    %622 = vmatpush1.bf16.msra.mxu0 0
    %623 = vmatprep.subr.bf16.mxu0 0
    %624 = vmatpush1.bf16.msra.mxu0 0
    %625 = vmatprep.subr.bf16.mxu0 0
    %626 = vmatpush1.bf16.msra.mxu0 0
    %627 = vmatprep.subr.bf16.mxu0 0
    %628 = vmatpush1.bf16.msra.mxu0 0
    %629 = vmatprep.subr.bf16.mxu0 0
    %630 = vmatpush1.bf16.msra.mxu0 0
    %631 = vmatprep.subr.bf16.mxu0 0
    %632 = vmatpush1.bf16.msra.mxu0 0
    %633 = vmatprep.subr.bf16.mxu0 0
    %634 = vmatpush1.bf16.msra.mxu0 0
    %635 = vmatprep.subr.bf16.mxu0 0
    %636 = vmatpush1.bf16.msra.mxu0 0
    %637 = vmatprep.subr.bf16.mxu0 0
    %638 = vmatpush1.bf16.msra.mxu0 0
    %639 = vmatprep.subr.bf16.mxu0 0
    %640 = vmatpush1.bf16.msra.mxu0 0
    %641 = vmatprep.mubr.bf16.mxu0 0
    %642 = vmatmul.mubr.bf16.gmra.mrb[0].mxu0 %v607
    %v643 = vpop.f32.mrb[0].mxu0
    %v644 = vadd.f32 0.0, %v643
    %v645 = vpop.f32.mrb[0].mxu0
    %v646 = vpop.f32.mrb[0].mxu0
    %v647 = vpop.f32.mrb[0].mxu0
    %648 = vdwg.mxu0
    %v650 = vrot.slane %v644, 4
    %v651 = vrot.slane %v644, 5
    %v654 = vadd.f32 %v128, %v650
    %v655 = vadd.f32 %v131, %v651
    %v656 = vxor.u32 %v654, 2147483648
    %v657 = vxor.u32 %v655, 2147483648
    %v658 = vmul.f32 %v656, 1.442695
    %v659 = vpow.pop %v658
    %v660 = vmul.f32 %v657, 1.442695
    %v661 = vpow.pop %v660
    %v662 = vadd.f32 %v659, 1.0
    %v663 = vadd.f32 %v661, 1.0
    %v664 = vrcp.pop %v662
    %v665 = vmul.f32 1.0, %v664
    %v666 = vrcp.pop %v663
    %v667 = vmul.f32 1.0, %v666
    %v668 = vtanh.pop %v654
    %v669 = vtanh.pop %v655
    %v672 = vrot.slane %v580, 7
    %v673 = vrot.slane %v581, 7
    %v676 = vmul.f32 %v665, %v672
    %v677 = vmul.f32 %v667, %v673
    %680 = vrot.lane.b32.xlu0 %v668, 32
    %v681 = vpop.permute.xlu0 %680
    %682 = vrot.lane.b32.xlu0 %v669, 32
    %v683 = vpop.permute.xlu0 %682
    %v686 = vmul.f32 %v665, %v681
    %v687 = vmul.f32 %v667, %v683
    %690 = vrot.lane.b32.xlu0 %v686, 32
    %v691 = vpop.permute.xlu0 %690
    %692 = vrot.lane.b32.xlu0 %v687, 32
    %v693 = vpop.permute.xlu0 %692
    %v696 = vadd.f32 %v676, %v691
    %v697 = vadd.f32 %v677, %v693
    %v698 = vtanh.pop %v696
    %v699 = vtanh.pop %v697
    %702 = vrot.lane.b32.xlu0 %v698, 32
    %v703 = vpop.permute.xlu0 %702
    %704 = vrot.lane.b32.xlu0 %v699, 32
    %v705 = vpop.permute.xlu0 %704
    %v708 = vmul.f32 %v665, %v703
    %v709 = vmul.f32 %v667, %v705
    %v710 = vpack.c.bf16 %v708, %v708
    %v711 = vpack.c.bf16 %v709, %v709
    %v714 = vunpack.c.l.b16 %v710
    %v715 = vunpack.c.l.b16 %v711
    %v716 = vrot.slane %v714, 4
    %v717 = vrot.slane %v715, 3
    %v718 = vsel %vm255, %v717, %v716
    %v719 = vpack.c.b16 %v718, %v718
    %720 = vrot.lane.b32.xlu0 %v719, 64
    %v721 = vpop.permute.xlu0 %720
    %v723 = vsel %vm150, %v721, 0
    %725 = vmatprep.subr.bf16.mxu0 0
    %726 = vmatpush1.bf16.msra.mxu0 %v146
    %727 = vmatprep.subr.bf16.mxu0 0
    %728 = vmatpush1.bf16.msra.mxu0 %v147
    %729 = vmatprep.subr.bf16.mxu0 0
    %730 = vmatpush1.bf16.msra.mxu0 0
    %731 = vmatprep.subr.bf16.mxu0 0
    %732 = vmatpush1.bf16.msra.mxu0 0
    %733 = vmatprep.subr.bf16.mxu0 0
    %734 = vmatpush1.bf16.msra.mxu0 0
    %735 = vmatprep.subr.bf16.mxu0 0
    %736 = vmatpush1.bf16.msra.mxu0 0
    %737 = vmatprep.subr.bf16.mxu0 0
    %738 = vmatpush1.bf16.msra.mxu0 0
    %739 = vmatprep.subr.bf16.mxu0 0
    %740 = vmatpush1.bf16.msra.mxu0 0
    %741 = vmatprep.subr.bf16.mxu0 0
    %742 = vmatpush1.bf16.msra.mxu0 0
    %743 = vmatprep.subr.bf16.mxu0 0
    %744 = vmatpush1.bf16.msra.mxu0 0
    %745 = vmatprep.subr.bf16.mxu0 0
    %746 = vmatpush1.bf16.msra.mxu0 0
    %747 = vmatprep.subr.bf16.mxu0 0
    %748 = vmatpush1.bf16.msra.mxu0 0
    %749 = vmatprep.subr.bf16.mxu0 0
    %750 = vmatpush1.bf16.msra.mxu0 0
    %751 = vmatprep.subr.bf16.mxu0 0
    %752 = vmatpush1.bf16.msra.mxu0 0
    %753 = vmatprep.subr.bf16.mxu0 0
    %754 = vmatpush1.bf16.msra.mxu0 0
    %755 = vmatprep.subr.bf16.mxu0 0
    %756 = vmatpush1.bf16.msra.mxu0 0
    %757 = vmatprep.mubr.bf16.mxu0 0
    %758 = vmatmul.mubr.bf16.gmra.mrb[0].mxu0 %v723
    %v759 = vpop.f32.mrb[0].mxu0
    %v760 = vadd.f32 0.0, %v759
    %v761 = vpop.f32.mrb[0].mxu0
    %v762 = vpop.f32.mrb[0].mxu0
    %v763 = vpop.f32.mrb[0].mxu0
    %764 = vdwg.mxu0
    %v766 = vrot.slane %v760, 3
    %v767 = vrot.slane %v760, 4
    %v770 = vadd.f32 %v128, %v766
    %v771 = vadd.f32 %v131, %v767
    %v772 = vxor.u32 %v770, 2147483648
    %v773 = vxor.u32 %v771, 2147483648
    %v774 = vmul.f32 %v772, 1.442695
    %v775 = vpow.pop %v774
    %v776 = vmul.f32 %v773, 1.442695
    %v777 = vpow.pop %v776
    %v778 = vadd.f32 %v775, 1.0
    %v779 = vadd.f32 %v777, 1.0
    %v780 = vrcp.pop %v778
    %v781 = vmul.f32 1.0, %v780
    %v782 = vrcp.pop %v779
    %v783 = vmul.f32 1.0, %v782
    %v784 = vtanh.pop %v770
    %v785 = vtanh.pop %v771
    %v788 = vrot.slane %v696, 7
    %v789 = vrot.slane %v697, 7
    %v792 = vmul.f32 %v781, %v788
    %v793 = vmul.f32 %v783, %v789
    %796 = vrot.lane.b32.xlu0 %v784, 32
    %v797 = vpop.permute.xlu0 %796
    %798 = vrot.lane.b32.xlu0 %v785, 32
    %v799 = vpop.permute.xlu0 %798
    %v802 = vmul.f32 %v781, %v797
    %v803 = vmul.f32 %v783, %v799
    %806 = vrot.lane.b32.xlu0 %v802, 32
    %v807 = vpop.permute.xlu0 %806
    %808 = vrot.lane.b32.xlu0 %v803, 32
    %v809 = vpop.permute.xlu0 %808
    %v812 = vadd.f32 %v792, %v807
    %v813 = vadd.f32 %v793, %v809
    %v814 = vtanh.pop %v812
    %v815 = vtanh.pop %v813
    %818 = vrot.lane.b32.xlu0 %v814, 32
    %v819 = vpop.permute.xlu0 %818
    %820 = vrot.lane.b32.xlu0 %v815, 32
    %v821 = vpop.permute.xlu0 %820
    %v824 = vmul.f32 %v781, %v819
    %v825 = vmul.f32 %v783, %v821
    %v826 = vpack.c.bf16 %v824, %v824
    %v827 = vpack.c.bf16 %v825, %v825
    %v830 = vunpack.c.l.b16 %v826
    %v831 = vunpack.c.l.b16 %v827
    %v832 = vrot.slane %v830, 5
    %v833 = vrot.slane %v831, 4
    %v834 = vsel %vm255, %v833, %v832
    %v835 = vpack.c.b16 %v834, %v834
    %836 = vrot.lane.b32.xlu0 %v835, 64
    %v837 = vpop.permute.xlu0 %836
    %v839 = vsel %vm150, %v837, 0
    %841 = vmatprep.subr.bf16.mxu0 0
    %842 = vmatpush1.bf16.msra.mxu0 %v146
    %843 = vmatprep.subr.bf16.mxu0 0
    %844 = vmatpush1.bf16.msra.mxu0 %v147
    %845 = vmatprep.subr.bf16.mxu0 0
    %846 = vmatpush1.bf16.msra.mxu0 0
    %847 = vmatprep.subr.bf16.mxu0 0
    %848 = vmatpush1.bf16.msra.mxu0 0
    %849 = vmatprep.subr.bf16.mxu0 0
    %850 = vmatpush1.bf16.msra.mxu0 0
    %851 = vmatprep.subr.bf16.mxu0 0
    %852 = vmatpush1.bf16.msra.mxu0 0
    %853 = vmatprep.subr.bf16.mxu0 0
    %854 = vmatpush1.bf16.msra.mxu0 0
    %855 = vmatprep.subr.bf16.mxu0 0
    %856 = vmatpush1.bf16.msra.mxu0 0
    %857 = vmatprep.subr.bf16.mxu0 0
    %858 = vmatpush1.bf16.msra.mxu0 0
    %859 = vmatprep.subr.bf16.mxu0 0
    %860 = vmatpush1.bf16.msra.mxu0 0
    %861 = vmatprep.subr.bf16.mxu0 0
    %862 = vmatpush1.bf16.msra.mxu0 0
    %863 = vmatprep.subr.bf16.mxu0 0
    %864 = vmatpush1.bf16.msra.mxu0 0
    %865 = vmatprep.subr.bf16.mxu0 0
    %866 = vmatpush1.bf16.msra.mxu0 0
    %867 = vmatprep.subr.bf16.mxu0 0
    %868 = vmatpush1.bf16.msra.mxu0 0
    %869 = vmatprep.subr.bf16.mxu0 0
    %870 = vmatpush1.bf16.msra.mxu0 0
    %871 = vmatprep.subr.bf16.mxu0 0
    %872 = vmatpush1.bf16.msra.mxu0 0
    %873 = vmatprep.mubr.bf16.mxu0 0
    %874 = vmatmul.mubr.bf16.gmra.mrb[0].mxu0 %v839
    %v875 = vpop.f32.mrb[0].mxu0
    %v876 = vadd.f32 0.0, %v875
    %v877 = vpop.f32.mrb[0].mxu0
    %v878 = vpop.f32.mrb[0].mxu0
    %v879 = vpop.f32.mrb[0].mxu0
    %880 = vdwg.mxu0
    %v882 = vrot.slane %v876, 2
    %v883 = vrot.slane %v876, 3
    %v886 = vadd.f32 %v128, %v882
    %v887 = vadd.f32 %v131, %v883
    %v888 = vxor.u32 %v886, 2147483648
    %v889 = vxor.u32 %v887, 2147483648
    %v890 = vmul.f32 %v888, 1.442695
    %v891 = vpow.pop %v890
    %v892 = vmul.f32 %v889, 1.442695
    %v893 = vpow.pop %v892
    %v894 = vadd.f32 %v891, 1.0
    %v895 = vadd.f32 %v893, 1.0
    %v896 = vrcp.pop %v894
    %v897 = vmul.f32 1.0, %v896
    %v898 = vrcp.pop %v895
    %v899 = vmul.f32 1.0, %v898
    %v900 = vtanh.pop %v886
    %v901 = vtanh.pop %v887
    %v904 = vrot.slane %v812, 7
    %v905 = vrot.slane %v813, 7
    %v908 = vmul.f32 %v897, %v904
    %v909 = vmul.f32 %v899, %v905
    %912 = vrot.lane.b32.xlu0 %v900, 32
    %v913 = vpop.permute.xlu0 %912
    %914 = vrot.lane.b32.xlu0 %v901, 32
    %v915 = vpop.permute.xlu0 %914
    %v918 = vmul.f32 %v897, %v913
    %v919 = vmul.f32 %v899, %v915
    %922 = vrot.lane.b32.xlu0 %v918, 32
    %v923 = vpop.permute.xlu0 %922
    %924 = vrot.lane.b32.xlu0 %v919, 32
    %v925 = vpop.permute.xlu0 %924
    %v928 = vadd.f32 %v908, %v923
    %v929 = vadd.f32 %v909, %v925
    %v930 = vtanh.pop %v928
    %v931 = vtanh.pop %v929
    %934 = vrot.lane.b32.xlu0 %v930, 32
    %v935 = vpop.permute.xlu0 %934
    %936 = vrot.lane.b32.xlu0 %v931, 32
    %v937 = vpop.permute.xlu0 %936
    %v940 = vmul.f32 %v897, %v935
    %v941 = vmul.f32 %v899, %v937
    %v942 = vpack.c.bf16 %v940, %v940
    %v943 = vpack.c.bf16 %v941, %v941
    %v946 = vunpack.c.l.b16 %v942
    %v947 = vunpack.c.l.b16 %v943
    %v948 = vrot.slane %v946, 6
    %v949 = vrot.slane %v947, 5
    %v950 = vsel %vm255, %v949, %v948
    %v951 = vpack.c.b16 %v950, %v950
    %952 = vrot.lane.b32.xlu0 %v951, 64
    %v953 = vpop.permute.xlu0 %952
    %v955 = vsel %vm150, %v953, 0
    %957 = vmatprep.subr.bf16.mxu0 0
    %958 = vmatpush1.bf16.msra.mxu0 %v146
    %959 = vmatprep.subr.bf16.mxu0 0
    %960 = vmatpush1.bf16.msra.mxu0 %v147
    %961 = vmatprep.subr.bf16.mxu0 0
    %962 = vmatpush1.bf16.msra.mxu0 0
    %963 = vmatprep.subr.bf16.mxu0 0
    %964 = vmatpush1.bf16.msra.mxu0 0
    %965 = vmatprep.subr.bf16.mxu0 0
    %966 = vmatpush1.bf16.msra.mxu0 0
    %967 = vmatprep.subr.bf16.mxu0 0
    %968 = vmatpush1.bf16.msra.mxu0 0
    %969 = vmatprep.subr.bf16.mxu0 0
    %970 = vmatpush1.bf16.msra.mxu0 0
    %971 = vmatprep.subr.bf16.mxu0 0
    %972 = vmatpush1.bf16.msra.mxu0 0
    %973 = vmatprep.subr.bf16.mxu0 0
    %974 = vmatpush1.bf16.msra.mxu0 0
    %975 = vmatprep.subr.bf16.mxu0 0
    %976 = vmatpush1.bf16.msra.mxu0 0
    %977 = vmatprep.subr.bf16.mxu0 0
    %978 = vmatpush1.bf16.msra.mxu0 0
    %979 = vmatprep.subr.bf16.mxu0 0
    %980 = vmatpush1.bf16.msra.mxu0 0
    %981 = vmatprep.subr.bf16.mxu0 0
    %982 = vmatpush1.bf16.msra.mxu0 0
    %983 = vmatprep.subr.bf16.mxu0 0
    %984 = vmatpush1.bf16.msra.mxu0 0
    %985 = vmatprep.subr.bf16.mxu0 0
    %986 = vmatpush1.bf16.msra.mxu0 0
    %987 = vmatprep.subr.bf16.mxu0 0
    %988 = vmatpush1.bf16.msra.mxu0 0
    %989 = vmatprep.mubr.bf16.mxu0 0
    %990 = vmatmul.mubr.bf16.gmra.mrb[0].mxu0 %v955
    %v991 = vpop.f32.mrb[0].mxu0
    %v992 = vadd.f32 0.0, %v991
    %v993 = vpop.f32.mrb[0].mxu0
    %v994 = vpop.f32.mrb[0].mxu0
    %v995 = vpop.f32.mrb[0].mxu0
    %996 = vdwg.mxu0
    %v998 = vrot.slane %v992, 1
    %v999 = vrot.slane %v992, 2
    %v1002 = vadd.f32 %v128, %v998
    %v1003 = vadd.f32 %v131, %v999
    %v1004 = vxor.u32 %v1002, 2147483648
    %v1005 = vxor.u32 %v1003, 2147483648
    %v1006 = vmul.f32 %v1004, 1.442695
    %v1007 = vpow.pop %v1006
    %v1008 = vmul.f32 %v1005, 1.442695
    %v1009 = vpow.pop %v1008
    %v1010 = vadd.f32 %v1007, 1.0
    %v1011 = vadd.f32 %v1009, 1.0
    %v1012 = vrcp.pop %v1010
    %v1013 = vmul.f32 1.0, %v1012
    %v1014 = vrcp.pop %v1011
    %v1015 = vmul.f32 1.0, %v1014
    %v1016 = vtanh.pop %v1002
    %v1017 = vtanh.pop %v1003
    %v1020 = vrot.slane %v928, 7
    %v1021 = vrot.slane %v929, 7
    %v1024 = vmul.f32 %v1013, %v1020
    %v1025 = vmul.f32 %v1015, %v1021
    %1028 = vrot.lane.b32.xlu0 %v1016, 32
    %v1029 = vpop.permute.xlu0 %1028
    %1030 = vrot.lane.b32.xlu0 %v1017, 32
    %v1031 = vpop.permute.xlu0 %1030
    %v1034 = vmul.f32 %v1013, %v1029
    %v1035 = vmul.f32 %v1015, %v1031
    %1038 = vrot.lane.b32.xlu0 %v1034, 32
    %v1039 = vpop.permute.xlu0 %1038
    %1040 = vrot.lane.b32.xlu0 %v1035, 32
    %v1041 = vpop.permute.xlu0 %1040
    %v1044 = vadd.f32 %v1024, %v1039
    %v1045 = vadd.f32 %v1025, %v1041
    %v1046 = vtanh.pop %v1044
    %v1047 = vtanh.pop %v1045
    %1050 = vrot.lane.b32.xlu0 %v1046, 32
    %v1051 = vpop.permute.xlu0 %1050
    %1052 = vrot.lane.b32.xlu0 %v1047, 32
    %v1053 = vpop.permute.xlu0 %1052
    %v1056 = vmul.f32 %v1013, %v1051
    %v1057 = vmul.f32 %v1015, %v1053
    %v1058 = vld [vmem:[%s4] sm:$0x1]
    %v1059 = vld [vmem:[#allocation2] sm:$0x1]
    %v1060 = vmax.f32 %v1056, 0.0
    %v1061 = vmax.f32 %v1057, 0.0
    %v1063 = vlaneseq
    %v1064 = vshrl.u32 %v1063, 7
    %v1065 = vsub.s32 0, %v1064
    %v1066 = vrot.slane %v1058, %v1065
    %1067 = vrot.lane.b32.xlu0 %v1066, 64
    %v1068 = vpop.permute.xlu0 %1067
    %v1070 = vmul.f32 %v1060, %v1068
    %v1071 = vmul.f32 %v1061, %v1068
    %v1074 = vrot.slane %v1071, 7
    %1075 = vrot.lane.b32.xlu0 %v1070, 64
    %v1076 = vpop.permute.xlu0 %1075
    %1077 = vrot.lane.b32.xlu0 %v1074, 64
    %v1078 = vpop.permute.xlu0 %1077
    %vm1081 = vcmask 261127
    %v1082 = vsel %vm1081, %v1076, 0.0
    %1083 = vadd.xlane.f32.xlu0 %v1082
    %v1084 = vpop.xlane.xlu0 %1083
    %vm1085 = vcmask 253952
    %v1086 = vsel %vm1085, %v1078, 0.0
    %1087 = vadd.xlane.f32.xlu0 %v1086
    %v1088 = vpop.xlane.xlu0 %1087
    %v1090 = vlaneseq
    %v1091 = vshrl.u32 %v1090, 7
    %v1092 = vsub.s32 0, %v1091
    %v1093 = vrot.slane %v1059, %v1092
    %v1095 = vadd.f32 %v1084, %v1093
    %v1096 = vadd.f32 %v1088, %v1093
    %vm1097 = vcmask 7175
    %1098 = vst.msk [vmem:[%s6 - $0x7] sm:$0x80] %vm1097, %v1095
    %vm1099 = vcmask 0
    %1100 = vst.msk [vmem:[%s6 + $0x1] sm:$0x1] %vm1099, %v1096
    // Predicated region
    $region38: #{tpu_custom_call.1} parent=1 // pred_check
      _
    $region39: #{tpu_custom_call.1} parent=1 // pred_check_branch
      %1102 = sbr.rel (0) target = $region41
    $region40: #{tpu_custom_call.1} parent=1 // pred_region
      _
    $region41: #{tpu_custom_call.1} parent=1 // pred_fallthru
      _
    // Predicated region
    $region42: #{tpu_custom_call.1} parent=1 // pred_check
      _
    $region43: #{tpu_custom_call.1} parent=1 // pred_check_branch
      %1104 = sbr.rel (0) target = $region45
    $region44: #{tpu_custom_call.1} parent=1 // pred_region
      _
    $region45: #{tpu_custom_call.1} parent=1 // pred_fallthru
      _
    %1105 = vsyncpa [#allocation4], 1
    %1106 = vsyncpa [#allocation6], 1

</llo_original>
